<compile_context>
chip_gen: v5e
topology: v5e:2x2
jax: 0.10.0
libtpu: 0.0.40
codegen_flags: <defaults>
</compile_context>

<pallas_src>
import numpy as np
import jax
import jax.numpy as jnp
from jax import lax
from jax.experimental import pallas as pl
from jax.experimental.pallas import tpu as pltpu


# -----------------------------------------------------------------------------
# Kernel 1: fused all-phase transposed-conv matmul + per-(batch, tile) BN sums.
# -----------------------------------------------------------------------------
def _deconv_stats_kernel(x_ref, w_ref, y_ref, sum_ref, ssq_ref):
    # x_ref:   (1, U2C, L)    bf16  contraction-major im2col slab (taps*Cin sublanes,
    #                               flattened Ho/s*Wo/s lane tile, zero-padded to %128)
    # w_ref:   (SSC, U2C)     bf16  fused phase weight matrix (SSC = s*s*Cout)
    # y_ref:   (1, SSC, L)    bf16  phase-separated conv output tile (lane-dense stores)
    # sum_ref: (1, 1, SSC, 1) f32   per-(batch, tile) partial sum        (reduced in XLA glue)
    # ssq_ref: (1, 1, SSC, 1) f32   per-(batch, tile) partial sum of sq  (reduced in XLA glue)
    acc = jnp.dot(w_ref[...], x_ref[0], preferred_element_type=jnp.float32)   # (SSC, L)
    y_ref[0] = acc.astype(y_ref.dtype)
    sum_ref[0, 0] = jnp.sum(acc, axis=1, keepdims=True)
    ssq_ref[0, 0] = jnp.sum(acc * acc, axis=1, keepdims=True)


# -----------------------------------------------------------------------------
# Kernel 2: fused BatchNorm (precomputed per-channel scale/shift) + ReLU.
# -----------------------------------------------------------------------------
def _bn_relu_kernel(y_ref, scale_ref, shift_ref, o_ref):
    y = y_ref[0].astype(jnp.float32)                                   # (SSC, Lt)
    o_ref[0] = jnp.maximum(y * scale_ref[...] + shift_ref[...], 0.0)


# -----------------------------------------------------------------------------
# Static helpers.
# -----------------------------------------------------------------------------
def _round_up(a, b):
    return (a + b - 1) // b * b


def _phase_plans(k, s, pb):
    """For each output phase p: list of (kernel tap kk, compact-input offset d)."""
    return [[(kk, (p + kk - pb) // s) for kk in range(k) if (p + kk - pb) % s == 0]
            for p in range(s)]


def _vmem_limit_and_budget():
    """Derive the Mosaic VMEM limit and a block-sizing budget from the actual chip."""
    cap = 64 * 1024 * 1024                       # conservative default (v7x-sized)
    try:
        info = pltpu.get_tpu_info()
        cap = int(getattr(info, "vmem_capacity_bytes", cap))
    except Exception:
        pass
    limit = min(cap - 4 * 1024 * 1024, 108 * 1024 * 1024)   # ~108 MiB on v5e/v6e, ~60 MiB on v7x
    return limit, limit - 6 * 1024 * 1024                    # leave headroom for internal scratch


def _pick_lane_tile(p_pad, bytes_per_lane, budget, requested=None):
    """Largest multiple-of-128 divisor of the padded pixel count that fits the VMEM budget."""
    if requested is not None:
        assert requested % 128 == 0 and p_pad % requested == 0, \
            "lane_tile must be a multiple of 128 dividing the padded pixel count"
        return requested
    cands = [d for d in range(128, p_pad + 1, 128) if p_pad % d == 0]
    for d in sorted(cands, reverse=True):
        if d * bytes_per_lane <= budget:
            return d
    return cands[0]


# -----------------------------------------------------------------------------
# Public wrapper (NCHW in / NCHW out, matching the PyTorch module).
# -----------------------------------------------------------------------------
def deconv_block_forward(x_nchw, wt, bias, gamma, beta, *, stride, padding,
                         output_padding, eps=1e-5, lane_tile=None,
                         y_dtype=jnp.bfloat16):
    """x_nchw: (N, Cin, H, W); wt: (Cin, Cout, K, K) PyTorch ConvTranspose2d weight."""
    del bias  # per-channel bias cancels exactly in the training-mode BatchNorm that follows
    n, cin, h, w = x_nchw.shape
    cin_w, cout, kh_, kw_ = wt.shape
    assert cin == cin_w and kh_ == kw_, "square kernels only"
    k, s, p, op = kh_, stride, padding, output_padding
    assert op < s, "output padding must be smaller than stride (PyTorch constraint)"
    pb = k - 1 - p
    ho = (h - 1) * s - 2 * p + k + op
    wo = (w - 1) * s - 2 * p + k + op
    assert ho % s == 0 and wo % s == 0, "sub-pixel layout needs stride | output size"
    ho_p, wo_p = ho // s, wo // s

    # --- static sub-pixel plan (which taps feed which output phase) --------------
    plans = _phase_plans(k, s, pb)
    u_off = sorted({d for plan in plans for (_, d) in plan})     # union of compact offsets
    nu = len(u_off)
    u_idx = {d: i for i, d in enumerate(u_off)}
    pad_lo = max(0, -u_off[0])
    pad_hi_h = max(0, ho_p - 1 + u_off[-1] - (h - 1))
    pad_hi_w = max(0, wo_p - 1 + u_off[-1] - (w - 1))
    u2c = nu * nu * cin
    ssc = s * s * cout

    # --- fused all-phase weight matrix (SSC, U2C), zeros for absent taps ---------
    zero_col = jnp.zeros((cout, cin), wt.dtype)
    row_blocks = []
    for ph in range(s):
        for pw in range(s):
            cols = [zero_col] * (nu * nu)
            for (tkh, dh) in plans[ph]:
                for (tkw, dw) in plans[pw]:
                    # flipped ConvTranspose2d weight for this tap, as (Cout, Cin)
                    cols[u_idx[dh] * nu + u_idx[dw]] = jnp.transpose(
                        wt[:, :, k - 1 - tkh, k - 1 - tkw])
            row_blocks.append(jnp.concatenate(cols, axis=1))
    wmat = jnp.concatenate(row_blocks, axis=0).astype(jnp.bfloat16)      # (SSC, U2C)

    # --- shared sub-pixel im2col, contraction-major, lane-dense ------------------
    # (U*U shifted copies of the compact input; a few x-sized HBM slabs in exchange for a
    #  pure lane-dense matmul kernel -- x is much smaller than y for this upsampling block.)
    xq = x_nchw.astype(jnp.bfloat16)
    xpad = jnp.pad(xq, ((0, 0), (0, 0), (pad_lo, pad_hi_h), (pad_lo, pad_hi_w)))
    slabs = []
    for du in u_off:
        for dv in u_off:
            r0, c0 = pad_lo + du, pad_lo + dv
            slabs.append(xpad[:, :, r0:r0 + ho_p, c0:c0 + wo_p])
    xcols = jnp.concatenate(slabs, axis=1)                               # (N, U2C, Ho_p, Wo_p)
    pix = ho_p * wo_p
    p_pad = _round_up(pix, 128)                                          # lane-dense stores
    xcols = xcols.reshape(n, u2c, pix)
    if p_pad != pix:
        xcols = jnp.pad(xcols, ((0, 0), (0, 0), (0, p_pad - pix)))       # zero cols -> zero y

    # --- VMEM-aware tile selection ------------------------------------------------
    vmem_limit, budget = _vmem_limit_and_budget()
    y_bytes = jnp.dtype(y_dtype).itemsize
    bpl1 = 2 * (u2c * 2 + ssc * y_bytes)          # double-buffered in + out bytes per lane
    lt1 = _pick_lane_tile(p_pad, bpl1, budget, lane_tile)
    n_t1 = p_pad // lt1

    y_ph, csum, cssq = pl.pallas_call(
        _deconv_stats_kernel,
        out_shape=(jax.ShapeDtypeStruct((n, ssc, p_pad), y_dtype),
                   jax.ShapeDtypeStruct((n, n_t1, ssc, 1), jnp.float32),
                   jax.ShapeDtypeStruct((n, n_t1, ssc, 1), jnp.float32)),
        grid_spec=pltpu.PrefetchScalarGridSpec(
            num_scalar_prefetch=0, grid=(n, n_t1),
            in_specs=[pl.BlockSpec((1, u2c, lt1), lambda i, t: (i, 0, t)),
                      pl.BlockSpec((ssc, u2c), lambda i, t: (0, 0))],
            out_specs=(pl.BlockSpec((1, ssc, lt1), lambda i, t: (i, 0, t)),
                       pl.BlockSpec((1, 1, ssc, 1), lambda i, t: (i, t, 0, 0)),
                       pl.BlockSpec((1, 1, ssc, 1), lambda i, t: (i, t, 0, 0)))),
        compiler_params=pltpu.CompilerParams(
            # stats are per-(batch, tile) blocks -> no cross-iteration state, both axes parallel
            dimension_semantics=("parallel", "parallel"),
            vmem_limit_bytes=vmem_limit),
    )(xcols, wmat)

    # --- training-mode BatchNorm folded into per-channel scale/shift --------------
    # NOTE: biased batch var via E[y^2]-E[y]^2 in f32 (sums taken from the f32 accumulator);
    # acceptable here because |mean| ~ std for conv activations; a centered two-pass would be
    # needed only for |mean| >> std regimes.
    count = jnp.float32(n * ho * wo)                       # padded lanes contribute exact zeros
    tot = jnp.sum(csum[..., 0], axis=(0, 1)).reshape(s * s, cout).sum(axis=0)
    tot2 = jnp.sum(cssq[..., 0], axis=(0, 1)).reshape(s * s, cout).sum(axis=0)
    mean = tot / count
    var = jnp.maximum(tot2 / count - mean * mean, 0.0)
    inv = gamma.astype(jnp.float32) / jnp.sqrt(var + eps)
    scale = jnp.tile(inv.reshape(cout, 1), (s * s, 1))                       # (SSC, 1)
    shift = jnp.tile((beta.astype(jnp.float32) - mean * inv).reshape(cout, 1), (s * s, 1))

    bpl2 = 2 * (ssc * y_bytes + ssc * 4)
    lt2 = _pick_lane_tile(p_pad, bpl2, budget)            # mem-bound: largest block that fits
    n_t2 = p_pad // lt2

    out_ph = pl.pallas_call(
        _bn_relu_kernel,
        out_shape=jax.ShapeDtypeStruct((n, ssc, p_pad), jnp.float32),
        grid_spec=pltpu.PrefetchScalarGridSpec(
            num_scalar_prefetch=0, grid=(n, n_t2),
            in_specs=[pl.BlockSpec((1, ssc, lt2), lambda i, t: (i, 0, t)),
                      pl.BlockSpec((ssc, 1), lambda i, t: (0, 0)),
                      pl.BlockSpec((ssc, 1), lambda i, t: (0, 0))],
            out_specs=pl.BlockSpec((1, ssc, lt2), lambda i, t: (i, 0, t))),
        compiler_params=pltpu.CompilerParams(
            dimension_semantics=("parallel", "parallel"),
            vmem_limit_bytes=vmem_limit),
    )(y_ph, scale, shift)

    # --- final stride-phase pixel shuffle back to NCHW -----------------------------
    # TODO(synk): the lane-level W-phase interleave has no robust Pallas store pattern
    # (lane-strided scatter); it is left to one XLA reshape/transpose. Downstream layers
    # could consume the phase-separated (N, s*s*Cout, Ho/s*Wo/s) layout directly to skip it.
    out = out_ph[:, :, :pix].reshape(n, s, s, cout, ho_p, wo_p)
    out = jnp.transpose(out, (0, 3, 4, 1, 5, 2)).reshape(n, cout, ho, wo)
    return out


if __name__ == "__main__":
    key = jax.random.PRNGKey(0)
    N, CIN, COUT, H, W = 2, 4, 8, 16, 16
    K, STRIDE, PAD, OUTPAD = 3, 2, 1, 1

    k1, k2, k3 = jax.random.split(key, 3)
    x = jax.random.normal(k1, (N, CIN, H, W), jnp.float32)
    bound = 1.0 / np.sqrt(CIN * K * K)
    wt = jax.random.uniform(k2, (CIN, COUT, K, K), jnp.float32, -bound, bound)
    bias = jax.random.uniform(k3, (COUT,), jnp.float32, -bound, bound)
    gamma = jnp.ones((COUT,), jnp.float32)     # BatchNorm2d default affine init
    beta = jnp.zeros((COUT,), jnp.float32)

    out = deconv_block_forward(x, wt, bias, gamma, beta,
                               stride=STRIDE, padding=PAD, output_padding=OUTPAD,
                               lane_tile=128)  # padded pixel dim = 256 -> 2 tiles: exercises tiling
    out = jax.block_until_ready(out)

    # pure-JAX reference (same semantics as the PyTorch module in training mode),
    # fed the same bf16-rounded x / weights that the kernel consumes.
    xq = x.astype(jnp.bfloat16).astype(jnp.float32)
    wq = wt.astype(jnp.bfloat16).astype(jnp.float32)
    w_conv = jnp.flip(wq, axis=(2, 3)).transpose(1, 0, 2, 3)     # (Cout, Cin, K, K)
    pbr, par = K - 1 - PAD, K - 1 - PAD + OUTPAD
    y_ref = lax.conv_general_dilated(
        xq, w_conv, window_strides=(1, 1),
        padding=[(pbr, par), (pbr, par)], lhs_dilation=(STRIDE, STRIDE),
        dimension_numbers=('NCHW', 'OIHW', 'NCHW'),
        precision=lax.Precision.HIGHEST) + bias[None, :, None, None]
    mu = y_ref.mean(axis=(0, 2, 3), keepdims=True)
    var = y_ref.var(axis=(0, 2, 3), keepdims=True)               # biased, like PyTorch training BN
    ref = jnp.maximum((y_ref - mu) / jnp.sqrt(var + 1e-5) * gamma[None, :, None, None]
                      + beta[None, :, None, None], 0.0)

    err = float(np.max(np.abs(np.asarray(out) - np.asarray(ref))))
    # tolerance covers the bf16 rounding of the stored conv intermediate (stats stay f32)
    assert np.allclose(np.asarray(out), np.asarray(ref), atol=3e-2, rtol=3e-2), err
    print("KERNEL_OK")
</pallas_src>

<mosaic_0001>
module attributes {stable_mosaic.version = 11 : i64} {
  func.func @_deconv_stats_kernel(%arg0: i32, %arg1: i32, %arg2: memref<1x16x128xbf16, #tpu.memory_space<vmem>>, %arg3: memref<32x16xbf16, #tpu.memory_space<vmem>>, %arg4: memref<1x32x128xbf16, #tpu.memory_space<vmem>>, %arg5: memref<1x1x32x1xf32, #tpu.memory_space<vmem>>, %arg6: memref<1x1x32x1xf32, #tpu.memory_space<vmem>>) attributes {dimension_semantics = [#tpu.dimension_semantics<parallel>, #tpu.dimension_semantics<parallel>], iteration_bounds = array<i64: 2, 2>, scalar_prefetch = 0 : i64, scratch_operands = 0 : i64, tpu.core_type = #tpu.core_type<tc>, window_params = [{transform_indices = @transform_0, window_bounds = array<i64: 1, 16, 128>}, {pipeline_mode = #tpu.pipeline_mode<synchronous>, transform_indices = @transform_1, window_bounds = array<i64: 32, 16>}, {transform_indices = @transform_2, window_bounds = array<i64: 1, 32, 128>}, {transform_indices = @transform_3, window_bounds = array<i64: 1, 1, 32, 1>}, {transform_indices = @transform_4, window_bounds = array<i64: 1, 1, 32, 1>}]} {
    %c0 = arith.constant 0 : index
    %c0_0 = arith.constant 0 : index
    %0 = vector.load %arg3[%c0, %c0_0] : memref<32x16xbf16, #tpu.memory_space<vmem>>, vector<32x16xbf16>
    %c0_1 = arith.constant 0 : index
    %c0_2 = arith.constant 0 : index
    %c0_3 = arith.constant 0 : index
    %1 = vector.load %arg2[%c0_1, %c0_2, %c0_3] : memref<1x16x128xbf16, #tpu.memory_space<vmem>>, vector<1x16x128xbf16>
    %2 = vector.shape_cast %1 : vector<1x16x128xbf16> to vector<16x128xbf16>
    %cst = arith.constant dense<0.000000e+00> : vector<32x128xf32>
    %3 = tpu.matmul %0, %2, %cst {dimension_numbers = #tpu.dot_dimension_numbers<[1], [0], [0], [1], [0, 0, 1, 1], [], []>} : vector<32x16xbf16>, vector<16x128xbf16>, vector<32x128xf32> -> vector<32x128xf32>
    %4 = arith.truncf %3 : vector<32x128xf32> to vector<32x128xbf16>
    %c0_4 = arith.constant 0 : index
    %c0_5 = arith.constant 0 : index
    %c0_6 = arith.constant 0 : index
    %5 = vector.load %arg4[%c0_4, %c0_5, %c0_6] : memref<1x32x128xbf16, #tpu.memory_space<vmem>>, vector<1x32x128xbf16>
    %6 = vector.shape_cast %5 : vector<1x32x128xbf16> to vector<32x128xbf16>
    %7 = vector.shape_cast %4 : vector<32x128xbf16> to vector<1x32x128xbf16>
    tpu.vector_store %arg4[%c0_4, %c0_5, %c0_6], %7 {strides = array<i32>} : memref<1x32x128xbf16, #tpu.memory_space<vmem>>, vector<1x32x128xbf16>,
    %cst_7 = arith.constant dense<0.000000e+00> : vector<32xf32>
    %8 = vector.multi_reduction <add>, %3, %cst_7 [1] : vector<32x128xf32> to vector<32xf32>
    %9 = vector.shape_cast %8 : vector<32xf32> to vector<32x1xf32>
    %c0_8 = arith.constant 0 : index
    %c0_9 = arith.constant 0 : index
    %c0_10 = arith.constant 0 : index
    %c0_11 = arith.constant 0 : index
    %10 = vector.load %arg5[%c0_8, %c0_9, %c0_10, %c0_11] : memref<1x1x32x1xf32, #tpu.memory_space<vmem>>, vector<1x1x32x1xf32>
    %11 = vector.shape_cast %10 : vector<1x1x32x1xf32> to vector<32x1xf32>
    %12 = vector.shape_cast %9 : vector<32x1xf32> to vector<1x1x32x1xf32>
    tpu.vector_store %arg5[%c0_8, %c0_9, %c0_10, %c0_11], %12 {strides = array<i32>} : memref<1x1x32x1xf32, #tpu.memory_space<vmem>>, vector<1x1x32x1xf32>,
    %13 = arith.mulf %3, %3 : vector<32x128xf32>
    %cst_12 = arith.constant dense<0.000000e+00> : vector<32xf32>
    %14 = vector.multi_reduction <add>, %13, %cst_12 [1] : vector<32x128xf32> to vector<32xf32>
    %15 = vector.shape_cast %14 : vector<32xf32> to vector<32x1xf32>
    %c0_13 = arith.constant 0 : index
    %c0_14 = arith.constant 0 : index
    %c0_15 = arith.constant 0 : index
    %c0_16 = arith.constant 0 : index
    %16 = vector.load %arg6[%c0_13, %c0_14, %c0_15, %c0_16] : memref<1x1x32x1xf32, #tpu.memory_space<vmem>>, vector<1x1x32x1xf32>
    %17 = vector.shape_cast %16 : vector<1x1x32x1xf32> to vector<32x1xf32>
    %18 = vector.shape_cast %15 : vector<32x1xf32> to vector<1x1x32x1xf32>
    tpu.vector_store %arg6[%c0_13, %c0_14, %c0_15, %c0_16], %18 {strides = array<i32>} : memref<1x1x32x1xf32, #tpu.memory_space<vmem>>, vector<1x1x32x1xf32>,
    return
  }
  func.func @transform_0(%arg0: i32, %arg1: i32) -> (i32, i32, i32) {
    %c0_i32 = arith.constant 0 : i32
    %c0_i32_0 = arith.constant 0 : i32
    return %arg0, %c0_i32, %arg1 : i32, i32, i32
  }
  func.func @transform_1(%arg0: i32, %arg1: i32) -> (i32, i32) {
    %c0_i32 = arith.constant 0 : i32
    %c0_i32_0 = arith.constant 0 : i32
    %c0_i32_1 = arith.constant 0 : i32
    return %c0_i32, %c0_i32_0 : i32, i32
  }
  func.func @transform_2(%arg0: i32, %arg1: i32) -> (i32, i32, i32) {
    %c0_i32 = arith.constant 0 : i32
    %c0_i32_0 = arith.constant 0 : i32
    return %arg0, %c0_i32, %arg1 : i32, i32, i32
  }
  func.func @transform_3(%arg0: i32, %arg1: i32) -> (i32, i32, i32, i32) {
    %c0_i32 = arith.constant 0 : i32
    %c0_i32_0 = arith.constant 0 : i32
    %c0_i32_1 = arith.constant 0 : i32
    return %arg0, %arg1, %c0_i32, %c0_i32_0 : i32, i32, i32, i32
  }
  func.func @transform_4(%arg0: i32, %arg1: i32) -> (i32, i32, i32, i32) {
    %c0_i32 = arith.constant 0 : i32
    %c0_i32_0 = arith.constant 0 : i32
    %c0_i32_1 = arith.constant 0 : i32
    return %arg0, %arg1, %c0_i32, %c0_i32_0 : i32, i32, i32, i32
  }
}

</mosaic_0001>

<llo_original>
// kernel: tpu_custom_call.1
$region0: #{tpu_custom_call.1}
  #allocation0 [shape = 'u32[]', space=smem, size = 0x4, offset = 0x4, fixed_abs, tag = 'smem constant byte address 0x4 - core index']
  #allocation1 [shape = 'u32[72,128]{1,0:T(1,128)}', space=vmem, size = 0x9000, scoped, tag = 'internal scratch']
  %s0 = inlined_call_operand.hbm [shape: bf16[2,16,256], index: 0, kind: input, shape index: {}]
  %s1 = inlined_call_operand.vmem [shape: bf16[32,16], index: 1, kind: input, shape index: {}]
  %s2 = inlined_call_operand.hbm [shape: bf16[2,32,256], index: 2, kind: output, shape index: {0}]
  %s3 = inlined_call_operand.vmem [shape: f32[2,2,32,1], index: 3, kind: output, shape index: {1}]
  %s4 = inlined_call_operand.vmem [shape: f32[2,2,32,1], index: 4, kind: output, shape index: {2}]
  %5 = xla_tuple %s2, %s3, %s4
  %s6 = sld [smem:[#allocation0]]
  $region61: #{tpu_custom_call.1} parent=0
    _
  %s8 = ssub.s32 1, %s6
  %s9 = scalar_select 0, %s8, %s6
  $region1: #{tpu_custom_call.1} parent=0
    #allocation2 [shape = 'u8[8192]{0}', space=vmem, size = 0x2000, scoped, tag = 'input window, operand 0']
    #allocation3 [shape = 's32[2]{0}', space=sflag, size = 0x8, scoped, tag = 'scoped memory for tpu_custom_call.1']
    #allocation4 [shape = 's32[2]{0}', space=sflag, size = 0x8, scoped, tag = 'scoped memory for tpu_custom_call.1']
    #allocation5 [shape = 'u8[16384]{0}', space=vmem, size = 0x4000, scoped, tag = 'output window, operand 0']
    %10 = vsyncpa [#allocation3], 0
    %s11 = scalar_lea.sflag [#allocation3], 1
    %12 = vsyncpa %s11, 0
    %13 = vsyncpa [#allocation4], 0
    %s14 = scalar_lea.sflag [#allocation4], 1
    %15 = vsyncpa %s14, 0
    loop: start=0, step=1, limit=6
    $region2: #{tpu_custom_call.1} parent=1 // loop_pre_header
      _
    $region3: #{tpu_custom_call.1} parent=1 // loop_header
      %s17 = sphi 0, %s21
      %p18 = scmp.ge.s32.totalorder %s17, 6
      %s24 = sphi 0, %s36
      %s25 = sphi 0, %s32
      %s26 = sphi 0, %s24
      %s27 = sphi 0, %s25
      %s28 = sphi 0, %s26
      %s29 = sphi 0, %s27
      %s41 = sphi 0, %s43
      %s44 = sphi 0, %s41
      %s45 = sphi 0, %s44
      %s61 = sphi 0, %s45
      %s65 = sphi 0, %s65
      %s67 = sphi 0, %s65
      %s68 = sphi 0, %s67
      %s82 = sphi 0, %s68
      %s90 = sphi 0, %s92
      %s93 = sphi 0, %s90
      %s94 = sphi 0, %s93
      %s110 = sphi 0, %s94
      %s118 = sphi 0, %s120
      %s121 = sphi 0, %s118
      %s122 = sphi 0, %s121
      %s138 = sphi 0, %s122
      %s146 = sphi 0, %s148
      %s149 = sphi 0, %s146
      %s150 = sphi 0, %s149
      %s166 = sphi 0, %s150
    $region4: #{tpu_custom_call.1} parent=1 // loop_header_branch
      %20 = sbr.rel (%p18) target = $region8
    $region5: #{tpu_custom_call.1} parent=1 // loop_body
      %s22 = ssub.s32 %s17, 1
      %s23 = ssub.s32 %s17, 2
      %s30 = sadd.s32 1, %s25
      %p31 = scmp.ge.s32.totalorder %s30, 2
      %s32 = scalar_select %p31, 0, %s30
      %s33 = sadd.s32 1, %s24
      %s34 = scalar_select %p31, %s33, %s24
      %p35 = scmp.ge.s32.totalorder %s34, 2
      %s36 = scalar_select %p35, 0, %s34
      %s37 = ssub.s32 %s24, %s36
      %s38 = ssub.s32 %s25, %s32
      %s39 = sor.u32 %s37, %s38
      %p40 = scmp.eq.s32.totalorder %s39, 0
      %s42 = sadd.s32 %s41, 1
      %s43 = scalar_select %p40, %s41, %s42
      %p46 = pneg %p40
      %p47 = scmp.eq.s32.totalorder %s17, 3
      %p48 = por %p46, %p47
      %p49 = scmp.ne.s32.totalorder %s41, %s44
      %p50 = scmp.eq.s32.totalorder %s17, 0
      %p51 = por %p49, %p50
      %p52 = scmp.ne.s32.totalorder %s41, %s44
      %p53 = scmp.eq.s32.totalorder %s22, 3
      %p54 = por %p52, %p53
      %p55 = scmp.ne.s32.totalorder %s44, %s45
      %p56 = scmp.eq.s32.totalorder %s22, 0
      %p57 = por %p55, %p56
      %p58 = scmp.ne.s32.totalorder %s44, %s45
      %p59 = scmp.eq.s32.totalorder %s23, 3
      %p60 = por %p58, %p59
      %p62 = scmp.ne.s32.totalorder %s45, %s61
      %p63 = scmp.eq.s32.totalorder %s23, 0
      %p64 = por %p62, %p63
      %s66 = sadd.s32 %s65, 1
      %p69 = scmp.eq.s32.totalorder %s17, 3
      %p70 = scmp.ne.s32.totalorder %s65, %s67
      %p71 = scmp.eq.s32.totalorder %s17, 0
      %p72 = por %p70, %p71
      %p73 = scmp.ne.s32.totalorder %s65, %s67
      %p74 = scmp.eq.s32.totalorder %s22, 3
      %p75 = por %p73, %p74
      %p76 = scmp.ne.s32.totalorder %s67, %s68
      %p77 = scmp.eq.s32.totalorder %s22, 0
      %p78 = por %p76, %p77
      %p79 = scmp.ne.s32.totalorder %s67, %s68
      %p80 = scmp.eq.s32.totalorder %s23, 3
      %p81 = por %p79, %p80
      %p83 = scmp.ne.s32.totalorder %s68, %s82
      %p84 = scmp.eq.s32.totalorder %s23, 0
      %p85 = por %p83, %p84
      %s86 = ssub.s32 %s24, %s36
      %s87 = ssub.s32 %s25, %s32
      %s88 = sor.u32 %s86, %s87
      %p89 = scmp.eq.s32.totalorder %s88, 0
      %s91 = sadd.s32 %s90, 1
      %s92 = scalar_select %p89, %s90, %s91
      %p95 = pneg %p89
      %p96 = scmp.eq.s32.totalorder %s17, 3
      %p97 = por %p95, %p96
      %p98 = scmp.ne.s32.totalorder %s90, %s93
      %p99 = scmp.eq.s32.totalorder %s17, 0
      %p100 = por %p98, %p99
      %p101 = scmp.ne.s32.totalorder %s90, %s93
      %p102 = scmp.eq.s32.totalorder %s22, 3
      %p103 = por %p101, %p102
      %p104 = scmp.ne.s32.totalorder %s93, %s94
      %p105 = scmp.eq.s32.totalorder %s22, 0
      %p106 = por %p104, %p105
      %p107 = scmp.ne.s32.totalorder %s93, %s94
      %p108 = scmp.eq.s32.totalorder %s23, 3
      %p109 = por %p107, %p108
      %p111 = scmp.ne.s32.totalorder %s94, %s110
      %p112 = scmp.eq.s32.totalorder %s23, 0
      %p113 = por %p111, %p112
      %s114 = ssub.s32 %s24, %s36
      %s115 = ssub.s32 %s25, %s32
      %s116 = sor.u32 %s114, %s115
      %p117 = scmp.eq.s32.totalorder %s116, 0
      %s119 = sadd.s32 %s118, 1
      %s120 = scalar_select %p117, %s118, %s119
      %p123 = pneg %p117
      %p124 = scmp.eq.s32.totalorder %s17, 3
      %p125 = por %p123, %p124
      %p126 = scmp.ne.s32.totalorder %s118, %s121
      %p127 = scmp.eq.s32.totalorder %s17, 0
      %p128 = por %p126, %p127
      %p129 = scmp.ne.s32.totalorder %s118, %s121
      %p130 = scmp.eq.s32.totalorder %s22, 3
      %p131 = por %p129, %p130
      %p132 = scmp.ne.s32.totalorder %s121, %s122
      %p133 = scmp.eq.s32.totalorder %s22, 0
      %p134 = por %p132, %p133
      %p135 = scmp.ne.s32.totalorder %s121, %s122
      %p136 = scmp.eq.s32.totalorder %s23, 3
      %p137 = por %p135, %p136
      %p139 = scmp.ne.s32.totalorder %s122, %s138
      %p140 = scmp.eq.s32.totalorder %s23, 0
      %p141 = por %p139, %p140
      %s142 = ssub.s32 %s24, %s36
      %s143 = ssub.s32 %s25, %s32
      %s144 = sor.u32 %s142, %s143
      %p145 = scmp.eq.s32.totalorder %s144, 0
      %s147 = sadd.s32 %s146, 1
      %s148 = scalar_select %p145, %s146, %s147
      %p151 = pneg %p145
      %p152 = scmp.eq.s32.totalorder %s17, 3
      %p153 = por %p151, %p152
      %p154 = scmp.ne.s32.totalorder %s146, %s149
      %p155 = scmp.eq.s32.totalorder %s17, 0
      %p156 = por %p154, %p155
      %p157 = scmp.ne.s32.totalorder %s146, %s149
      %p158 = scmp.eq.s32.totalorder %s22, 3
      %p159 = por %p157, %p158
      %p160 = scmp.ne.s32.totalorder %s149, %s150
      %p161 = scmp.eq.s32.totalorder %s22, 0
      %p162 = por %p160, %p161
      %p163 = scmp.ne.s32.totalorder %s149, %s150
      %p164 = scmp.eq.s32.totalorder %s23, 3
      %p165 = por %p163, %p164
      %p167 = scmp.ne.s32.totalorder %s150, %s166
      %p168 = scmp.eq.s32.totalorder %s23, 0
      %p169 = por %p167, %p168
      %p170 = scmp.le.s32.totalorder 1, %s17
      %p171 = scmp.lt.s32.totalorder %s17, 5
      %p172 = pnand %p170, %p171
      %p173 = pneg %p172
      // Predicated region
      $region9: #{tpu_custom_call.1} parent=5 // pred_check
        _
      $region10: #{tpu_custom_call.1} parent=5 // pred_check_branch
        %175 = sbr.rel (%p172) target = $region12
      $region11: #{tpu_custom_call.1} parent=5 // pred_region
        %s176 = ssub.s32 %s17, 1
        // Predicated region
        $region13: #{tpu_custom_call.1} parent=11 // pred_check
          %p177 = pneg %p78
        $region14: #{tpu_custom_call.1} parent=11 // pred_check_branch
          %179 = sbr.rel (%p177) target = $region16
        $region15: #{tpu_custom_call.1} parent=11 // pred_region
          _
        $region16: #{tpu_custom_call.1} parent=11 // pred_fallthru
          _
      $region12: #{tpu_custom_call.1} parent=5 // pred_fallthru
        _
      %p180 = scmp.lt.s32.totalorder %s17, 4
      // Predicated region
      $region17: #{tpu_custom_call.1} parent=5 // pred_check
        %p181 = pneg %p180
      $region18: #{tpu_custom_call.1} parent=5 // pred_check_branch
        %183 = sbr.rel (%p181) target = $region20
      $region19: #{tpu_custom_call.1} parent=5 // pred_region
        // Predicated region
        $region21: #{tpu_custom_call.1} parent=19 // pred_check
          %p184 = pneg %p51
        $region22: #{tpu_custom_call.1} parent=19 // pred_check_branch
          %186 = sbr.rel (%p184) target = $region24
        $region23: #{tpu_custom_call.1} parent=19 // pred_region
          %s187 = sand.u32 %s41, 1
          %s188 = scalar_lea.sflag [#allocation3], %s187
          %s189 = sand.u32 %s41, 1
          %s190 = smul.addr %s189, 8
          %s191 = scalar_lea.vmem [#allocation2], %s190
          %193 = vsyncadd %s188, 0
          %s194 = smul.addr %s24, 4
          %s195 = sadd.s32 %s25, %s194
          %s196 = smul.addr %s195, 4
          %s197 = scalar_lea.hbm %s0, %s196
          %s198 = sshll.u32 %s197, 4
          %s199 = int_to_ptr.hbm [resolvable:$true] %s198
          %s200 = sshll.u32 %s191, 4
          %s201 = int_to_ptr.vmem [resolvable:$true] %s200
          %206 = dma.hbm_to_vmem [thread:$0]  %s199, 128, %s201, %s188, 128, 64, 4
        $region24: #{tpu_custom_call.1} parent=19 // pred_fallthru
          _
      $region20: #{tpu_custom_call.1} parent=5 // pred_fallthru
        _
      %p207 = scmp.le.s32.totalorder 1, %s17
      %p208 = scmp.lt.s32.totalorder %s17, 5
      %p209 = pnand %p207, %p208
      %p210 = pneg %p209
      // Predicated region
      $region25: #{tpu_custom_call.1} parent=5 // pred_check
        _
      $region26: #{tpu_custom_call.1} parent=5 // pred_check_branch
        %212 = sbr.rel (%p209) target = $region28
      $region27: #{tpu_custom_call.1} parent=5 // pred_region
        %s213 = ssub.s32 %s17, 1
        %s214 = sand.u32 %s44, 1
        %s215 = scalar_lea.sflag [#allocation3], %s214
        %s216 = sand.u32 %s44, 1
        %s217 = smul.addr %s216, 8
        %s218 = scalar_lea.vmem [#allocation2], %s217
        // Predicated region
        $region29: #{tpu_custom_call.1} parent=27 // pred_check
          %p219 = pneg %p57
        $region30: #{tpu_custom_call.1} parent=27 // pred_check_branch
          %221 = sbr.rel (%p219) target = $region32
        $region31: #{tpu_custom_call.1} parent=27 // pred_region
          %223 = dma.done %s215, 128
        $region32: #{tpu_custom_call.1} parent=27 // pred_fallthru
          _
        %s224 = sand.u32 %s44, 1
        %s225 = scalar_lea.sflag [#allocation3], %s224
        %s226 = sand.u32 %s44, 1
        %s227 = smul.addr %s226, 8
        %s228 = scalar_lea.vmem [#allocation2], %s227
        %p229 = pneg %p57
        %p230 = pneg %p54
        %p231 = pneg %p78
        %p232 = pneg %p75
        %p233 = pneg %p106
        %p234 = pneg %p103
        %s235 = sand.u32 %s93, 1
        %s236 = scalar_lea.sflag [#allocation4], %s235
        %s237 = sand.u32 %s93, 1
        %s238 = smul.addr %s237, 16
        %s239 = scalar_lea.vmem [#allocation5], %s238
        %p240 = pneg %p134
        %p241 = pneg %p131
        %p242 = scmp.lt.s32.totalorder %s26, 1
        %s243 = scalar_select %p242, %s26, 1
        %p244 = scmp.lt.s32.totalorder %s27, 1
        %s245 = scalar_select %p244, %s27, 1
        %s246 = smul.addr %s245, 4
        %s247 = smul.addr %s243, 8
        %s248 = sadd.s32 %s246, %s247
        %s249 = smul.addr %s248, 8
        %s250 = scalar_lea.vmem %s3, %s249
        %p251 = pneg %p162
        %p252 = pneg %p159
        %p253 = scmp.lt.s32.totalorder %s26, 1
        %s254 = scalar_select %p253, %s26, 1
        %p255 = scmp.lt.s32.totalorder %s27, 1
        %s256 = scalar_select %p255, %s27, 1
        %s257 = smul.addr %s256, 4
        %s258 = smul.addr %s254, 8
        %s259 = sadd.s32 %s257, %s258
        %s260 = smul.addr %s259, 8
        %s261 = scalar_lea.vmem %s4, %s260
        %p262 = scmp.lt.s32.totalorder %s26, 1
        %s263 = scalar_select %p262, %s26, 1
        %p264 = scmp.lt.s32.totalorder %s27, 1
        %s265 = scalar_select %p264, %s27, 1
        %s266 = smul.addr %s265, 4
        %s267 = smul.addr %s263, 8
        %s268 = sadd.s32 %s266, %s267
        %s269 = smul.addr %s268, 8
        %s270 = scalar_lea.vmem %s3, %s269
        %p271 = scmp.lt.s32.totalorder %s26, 1
        %s272 = scalar_select %p271, %s26, 1
        %p273 = scmp.lt.s32.totalorder %s27, 1
        %s274 = scalar_select %p273, %s27, 1
        %s275 = smul.addr %s274, 4
        %s276 = smul.addr %s272, 8
        %s277 = sadd.s32 %s275, %s276
        %s278 = smul.addr %s277, 8
        %s279 = scalar_lea.vmem %s4, %s278
        %v281 = vld [vmem:[%s1] sm:$0xf]
        %v282 = vld [vmem:[%s1 + $0x4] sm:$0xf]
        %v283 = vld [vmem:[%s1 + $0x8] sm:$0xf]
        %v284 = vld [vmem:[%s1 + $0xc] sm:$0xf]
        %v285 = vld [vmem:[%s218] sm:$0xf]
        %v286 = vld [vmem:[%s218 + $0x4] sm:$0xf]
        %v291 = vunpack.c.l.b16 %v281
        %v292 = vunpack.c.l.b16 %v282
        %v293 = vunpack.c.l.b16 %v283
        %v294 = vunpack.c.l.b16 %v284
        %v295 = vpack.c.b16 %v292, %v291
        %v296 = vpack.c.b16 %v294, %v293
        %v299 = vunpack.c.l.b16 %v285
        %v300 = vunpack.c.l.b16 %v286
        %v301 = vpack.c.b16 %v300, %v299
        %vm303 = vcmask 130048
        %v305 = vsel %vm303, %v295, 0
        %v308 = vsel %vm303, %v296, 0
        %310 = vmatpush.bf16.msra.mxu0 0
        %311 = vmatpush.bf16.msra.mxu0 0
        %312 = vmatpush.bf16.msra.mxu0 0
        %313 = vmatpush.bf16.msra.mxu0 0
        %314 = vmatpush.bf16.msra.mxu0 0
        %315 = vmatpush.bf16.msra.mxu0 0
        %316 = vmatpush.bf16.msra.mxu0 0
        %317 = vmatpush.bf16.msra.mxu0 %v301
        %318 = vmatmul.bf16.gmra.mxu0 %v305
        %v319 = vpop.f32.mrf.mxu0
        %v320 = vadd.f32 0.0, %v319
        %v321 = vpop.f32.mrf.mxu0
        %v322 = vadd.f32 0.0, %v321
        %323 = vmatmul.bf16.gmra.mxu0 %v308
        %v324 = vpop.f32.mrf.mxu0
        %v325 = vadd.f32 0.0, %v324
        %v326 = vpop.f32.mrf.mxu0
        %v327 = vadd.f32 0.0, %v326
        %328 = vdwg.mxu0
        %v329 = vpack.c.bf16 %v320, %v320
        %v330 = vpack.c.bf16 %v322, %v322
        %v331 = vpack.c.bf16 %v325, %v325
        %v332 = vpack.c.bf16 %v327, %v327
        %333 = vst [vmem:[%s239] sm:$0xf] %v329
        %334 = vst [vmem:[%s239 + $0x4] sm:$0xf] %v330
        %335 = vst [vmem:[%s239 + $0x8] sm:$0xf] %v331
        %336 = vst [vmem:[%s239 + $0xc] sm:$0xf] %v332
        %337 = vadd.xlane.f32.xlu0 %v320
        %v338 = vpop.xlane.xlu0 %337
        %339 = vadd.xlane.f32.xlu0 %v322
        %v340 = vpop.xlane.xlu0 %339
        %341 = vadd.xlane.f32.xlu0 %v325
        %v342 = vpop.xlane.xlu0 %341
        %343 = vadd.xlane.f32.xlu0 %v327
        %v344 = vpop.xlane.xlu0 %343
        %vm345 = vcmask 7168
        %346 = vst.msk [vmem:[%s270] sm:$0xff] %vm345, %v338
        %347 = vst.msk [vmem:[%s270 + $0x8] sm:$0xff] %vm345, %v340
        %348 = vst.msk [vmem:[%s270 + $0x10] sm:$0xff] %vm345, %v342
        %349 = vst.msk [vmem:[%s270 + $0x18] sm:$0xff] %vm345, %v344
        %v350 = vmul.f32 %v320, %v320
        %v351 = vmul.f32 %v322, %v322
        %v352 = vmul.f32 %v325, %v325
        %v353 = vmul.f32 %v327, %v327
        %354 = vadd.xlane.f32.xlu0 %v350
        %v355 = vpop.xlane.xlu0 %354
        %356 = vadd.xlane.f32.xlu0 %v351
        %v357 = vpop.xlane.xlu0 %356
        %358 = vadd.xlane.f32.xlu0 %v352
        %v359 = vpop.xlane.xlu0 %358
        %360 = vadd.xlane.f32.xlu0 %v353
        %v361 = vpop.xlane.xlu0 %360
        %362 = vst.msk [vmem:[%s279] sm:$0xff] %vm345, %v355
        %363 = vst.msk [vmem:[%s279 + $0x8] sm:$0xff] %vm345, %v357
        %364 = vst.msk [vmem:[%s279 + $0x10] sm:$0xff] %vm345, %v359
        %365 = vst.msk [vmem:[%s279 + $0x18] sm:$0xff] %vm345, %v361
        %s366 = sand.u32 %s93, 1
        %s367 = scalar_lea.sflag [#allocation4], %s366
        %s368 = sand.u32 %s93, 1
        %s369 = smul.addr %s368, 16
        %s370 = scalar_lea.vmem [#allocation5], %s369
        %p371 = scmp.lt.s32.totalorder %s26, 1
        %s372 = scalar_select %p371, %s26, 1
        %p373 = scmp.lt.s32.totalorder %s27, 1
        %s374 = scalar_select %p373, %s27, 1
        %s375 = smul.addr %s374, 4
        %s376 = smul.addr %s372, 8
        %s377 = sadd.s32 %s375, %s376
        %s378 = smul.addr %s377, 8
        %s379 = scalar_lea.vmem %s3, %s378
        %p380 = scmp.lt.s32.totalorder %s26, 1
        %s381 = scalar_select %p380, %s26, 1
        %p382 = scmp.lt.s32.totalorder %s27, 1
        %s383 = scalar_select %p382, %s27, 1
        %s384 = smul.addr %s383, 4
        %s385 = smul.addr %s381, 8
        %s386 = sadd.s32 %s384, %s385
        %s387 = smul.addr %s386, 8
        %s388 = scalar_lea.vmem %s4, %s387
        // Predicated region
        $region33: #{tpu_custom_call.1} parent=27 // pred_check
          %p389 = pneg %p103
        $region34: #{tpu_custom_call.1} parent=27 // pred_check_branch
          %391 = sbr.rel (%p389) target = $region36
        $region35: #{tpu_custom_call.1} parent=27 // pred_region
          %393 = vsyncadd %s367, 0
          %s394 = smul.addr %s26, 8
          %s395 = sadd.s32 %s27, %s394
          %s396 = smul.addr %s395, 4
          %s397 = scalar_lea.hbm %s2, %s396
          %s398 = sshll.u32 %s370, 4
          %s399 = int_to_ptr.vmem [resolvable:$true] %s398
          %s400 = sshll.u32 %s397, 4
          %s401 = int_to_ptr.hbm [resolvable:$true] %s400
          %406 = dma.vmem_to_hbm [thread:$0]  %s399, 256, %s401, %s367, 64, 128, 4
        $region36: #{tpu_custom_call.1} parent=27 // pred_fallthru
          _
        // Predicated region
        $region37: #{tpu_custom_call.1} parent=27 // pred_check
          %p407 = pneg %p131
        $region38: #{tpu_custom_call.1} parent=27 // pred_check_branch
          %409 = sbr.rel (%p407) target = $region40
        $region39: #{tpu_custom_call.1} parent=27 // pred_region
          _
        $region40: #{tpu_custom_call.1} parent=27 // pred_fallthru
          _
        // Predicated region
        $region41: #{tpu_custom_call.1} parent=27 // pred_check
          %p410 = pneg %p159
        $region42: #{tpu_custom_call.1} parent=27 // pred_check_branch
          %412 = sbr.rel (%p410) target = $region44
        $region43: #{tpu_custom_call.1} parent=27 // pred_region
          _
        $region44: #{tpu_custom_call.1} parent=27 // pred_fallthru
          _
      $region28: #{tpu_custom_call.1} parent=5 // pred_fallthru
        _
      %p413 = scmp.le.s32.totalorder 2, %s17
      // Predicated region
      $region45: #{tpu_custom_call.1} parent=5 // pred_check
        %p414 = pneg %p413
      $region46: #{tpu_custom_call.1} parent=5 // pred_check_branch
        %416 = sbr.rel (%p414) target = $region48
      $region47: #{tpu_custom_call.1} parent=5 // pred_region
        %s417 = ssub.s32 %s17, 2
        // Predicated region
        $region49: #{tpu_custom_call.1} parent=47 // pred_check
          %p418 = pneg %p109
        $region50: #{tpu_custom_call.1} parent=47 // pred_check_branch
          %420 = sbr.rel (%p418) target = $region52
        $region51: #{tpu_custom_call.1} parent=47 // pred_region
          %s421 = sand.u32 %s94, 1
          %s422 = scalar_lea.sflag [#allocation4], %s421
          %s423 = sand.u32 %s94, 1
          %s424 = smul.addr %s423, 16
          %s425 = scalar_lea.vmem [#allocation5], %s424
          %427 = dma.done %s422, 256
        $region52: #{tpu_custom_call.1} parent=47 // pred_fallthru
          _
        // Predicated region
        $region53: #{tpu_custom_call.1} parent=47 // pred_check
          %p428 = pneg %p137
        $region54: #{tpu_custom_call.1} parent=47 // pred_check_branch
          %430 = sbr.rel (%p428) target = $region56
        $region55: #{tpu_custom_call.1} parent=47 // pred_region
          %p431 = scmp.lt.s32.totalorder %s28, 1
          %s432 = scalar_select %p431, %s28, 1
          %p433 = scmp.lt.s32.totalorder %s29, 1
          %s434 = scalar_select %p433, %s29, 1
          %s435 = smul.addr %s434, 4
          %s436 = smul.addr %s432, 8
          %s437 = sadd.s32 %s435, %s436
          %s438 = smul.addr %s437, 8
          %s439 = scalar_lea.vmem %s3, %s438
        $region56: #{tpu_custom_call.1} parent=47 // pred_fallthru
          _
        // Predicated region
        $region57: #{tpu_custom_call.1} parent=47 // pred_check
          %p440 = pneg %p165
        $region58: #{tpu_custom_call.1} parent=47 // pred_check_branch
          %442 = sbr.rel (%p440) target = $region60
        $region59: #{tpu_custom_call.1} parent=47 // pred_region
          %p443 = scmp.lt.s32.totalorder %s28, 1
          %s444 = scalar_select %p443, %s28, 1
          %p445 = scmp.lt.s32.totalorder %s29, 1
          %s446 = scalar_select %p445, %s29, 1
          %s447 = smul.addr %s446, 4
          %s448 = smul.addr %s444, 8
          %s449 = sadd.s32 %s447, %s448
          %s450 = smul.addr %s449, 8
          %s451 = scalar_lea.vmem %s4, %s450
        $region60: #{tpu_custom_call.1} parent=47 // pred_fallthru
          _
      $region48: #{tpu_custom_call.1} parent=5 // pred_fallthru
        _
    $region6: #{tpu_custom_call.1} parent=1 // loop_footer
      %s21 = sadd.s32 1, %s17
    $region7: #{tpu_custom_call.1} parent=1 // loop_footer_branch
      %16 = sbr.rel target = $region3
    $region8: #{tpu_custom_call.1} parent=1 // loop_exit
      _
    %452 = vsyncpa [#allocation3], 1
    %s453 = scalar_lea.sflag [#allocation3], 1
    %454 = vsyncpa %s453, 1
    %455 = vsyncpa [#allocation4], 1
    %s456 = scalar_lea.sflag [#allocation4], 1
    %457 = vsyncpa %s456, 1

</llo_original>
